<compile_context>
chip_gen: v5e
topology: v5e:2x2
jax: 0.10.0
libtpu: 0.0.40
codegen_flags: <defaults>
</compile_context>

<pallas_src>
import jax
import jax.numpy as jnp
from jax import lax
from jax.experimental import pallas as pl
from jax.experimental.pallas import tpu as pltpu


def _pick_tile(t, t_out, c_in, c_out, in_bytes):
    """Time-tile width: one full tile for short 'same' convs, otherwise a lane-dense
    128-multiple sized so the double-buffered streams fit a conservative VMEM budget
    (safe on v7x's 64 MiB; bumps to 1024 on 128 MiB parts)."""
    def stream_bytes(tt):
        # x stream (x2 buffers) + out stream (x2) + f32 acc + window temp
        return (2 * c_in * tt + 2 * c_out * tt) * in_bytes + (c_out + c_in) * tt * 4

    budget = 24 << 20
    if t == t_out and t_out <= 1024 and stream_bytes(t_out) <= budget:
        return t_out
    try:
        vmem_cap = getattr(pltpu.get_tpu_info(), "vmem_capacity_bytes", 64 << 20)
    except Exception:
        vmem_cap = 64 << 20
    tt = 1024 if vmem_cap >= (100 << 20) else 512
    while tt > 128 and stream_bytes(tt) > budget:
        tt //= 2
    return min(tt, max(128, pl.cdiv(t_out, 128) * 128))


def conv_norm(x, weight, bias=None, *, kernel_size, stride=1, padding=None,
              dilation=1, transpose=False, tile_t=None, compute_dtype=None):
    """Pallas TPU ConvNorm.forward.

    x: (B, C_in, T), or (B, T, C_in) when transpose=True (module semantics).
    weight: (C_out, C_in, K) (nn.Conv1d layout), bias: (C_out,) or None.
    compute_dtype: optional MXU operand dtype (e.g. jnp.bfloat16); accumulation is f32.
    """
    assert stride == 1  # TODO(synk): strided Conv1d (stride > 1) not implemented.
    if padding is None:
        assert kernel_size % 2 == 1
        padding = int(dilation * (kernel_size - 1) / 2)

    channels_last = transpose            # transpose path runs natively in (B, T, C)
    if channels_last:
        b, t, c_in = x.shape
    else:
        b, c_in, t = x.shape
    c_out, c_in_w, k_taps = weight.shape
    assert c_in_w == c_in and k_taps == kernel_size

    dil_span = dilation * (kernel_size - 1)
    t_out = t + 2 * padding - dil_span
    assert t_out > 0
    hal_l = padding                          # left halo width (conv pad_left)
    hal_r = max(dil_span - padding, 0)       # right halo width

    if bias is None:
        bias = jnp.zeros((c_out,), jnp.float32)

    in_bytes = jnp.dtype(x.dtype).itemsize
    mxu_dtype = jnp.dtype(compute_dtype) if compute_dtype is not None else jnp.dtype(x.dtype)

    if tile_t is None:
        tile_t = _pick_tile(t, t_out, c_in, c_out, in_bytes)
    assert (tile_t % 128 == 0) or (tile_t == t and tile_t == t_out), (
        "tile_t must be a multiple of 128, or equal to both T and T_out")

    nt = pl.cdiv(t_out, tile_t)              # output (and grid) time tiles
    nt_in = pl.cdiv(t, tile_t)               # input blocks along time
    # Mask inside the kernel ONLY when some tile's block can run past the end of x
    # (ragged last tile or padding larger than 'same').  Aligned configs never mask.
    mask_tail = nt * tile_t > t

    # ---- tiny wrapper-side halo tensors --------------------------------------------------
    # Tile j additionally needs the columns [j*tile_t - hal_l, j*tile_t) and
    # [(j+1)*tile_t, (j+1)*tile_t + hal_r).  Reading them here costs ~dil_span/tile_t of x
    # and bakes the conv zero-padding in (so interior tiles do no masking).  Works for
    # arbitrarily large padding / dilation spans.
    time_axis = 1 if channels_last else 2

    def build_halo(starts, width):
        cols = starts[:, None] + jnp.arange(width, dtype=jnp.int32)[None, :]   # (nt, width)
        valid = (cols >= 0) & (cols < t)
        g = jnp.take(x, jnp.clip(cols, 0, t - 1).reshape(-1), axis=time_axis)
        if channels_last:
            g = g.reshape(b, nt, width, c_in)
            g = jnp.where(valid[None, :, :, None], g, 0)
        else:
            g = g.reshape(b, c_in, nt, width)
            g = jnp.where(valid[None, None, :, :], g, 0)
            g = jnp.transpose(g, (0, 2, 1, 3))           # (B, nt, C_in, width)
        return g

    tile_starts = jnp.arange(nt, dtype=jnp.int32) * tile_t
    left_halo = build_halo(tile_starts - hal_l, hal_l) if hal_l > 0 else None
    right_halo = build_halo(tile_starts + tile_t, hal_r) if hal_r > 0 else None

    # ---- weights: tap-major, resident in VMEM across the whole grid ----------------------
    if channels_last:
        w_taps = jnp.transpose(weight, (2, 1, 0)).astype(mxu_dtype)    # (K, C_in, C_out)
        bias2d = bias.astype(jnp.float32).reshape(1, c_out)
    else:
        w_taps = jnp.transpose(weight, (2, 0, 1)).astype(mxu_dtype)    # (K, C_out, C_in)
        bias2d = bias.astype(jnp.float32).reshape(c_out, 1)

    # ---- kernel ---------------------------------------------------------------------------
    def kernel(*refs):
        idx = 0
        x_ref = refs[idx]; idx += 1
        l_ref = r_ref = None
        if hal_l > 0:
            l_ref = refs[idx]; idx += 1
        if hal_r > 0:
            r_ref = refs[idx]; idx += 1
        w_ref, b_ref, o_ref = refs[idx], refs[idx + 1], refs[idx + 2]

        j = pl.program_id(1)
        cur = x_ref[0]                        # (C_in, tile_t) or (tile_t, C_in)

        if mask_tail:
            # Zero block columns past the end of x (emitted only for ragged configs).
            u = lax.broadcasted_iota(jnp.int32, cur.shape, 0 if channels_last else 1)
            cur = jnp.where(u < (t - j * tile_t), cur, 0)

        pieces = []
        if hal_l > 0:
            pieces.append(l_ref[0, 0])
        pieces.append(cur)
        if hal_r > 0:
            pieces.append(r_ref[0, 0])
        window = (jnp.concatenate(pieces, axis=0 if channels_last else 1)
                  if len(pieces) > 1 else cur)
        window = window.astype(mxu_dtype)

        # K taps as K MXU matmuls accumulated in f32 (no im2col materialization).
        acc = None
        for kk in range(kernel_size):
            off = kk * dilation
            if channels_last:
                part = jnp.dot(window[off:off + tile_t, :], w_ref[kk],
                               preferred_element_type=jnp.float32)
            else:
                part = jnp.dot(w_ref[kk], window[:, off:off + tile_t],
                               preferred_element_type=jnp.float32)
            acc = part if acc is None else acc + part

        o_ref[0] = (acc + b_ref[...]).astype(o_ref.dtype)

    # ---- specs / grid ----------------------------------------------------------------------
    halo_map = lambda bb, jj: (bb, jj, 0, 0)
    const3_map = lambda bb, jj: (0, 0, 0)
    const2_map = lambda bb, jj: (0, 0)

    if channels_last:
        x_spec = pl.BlockSpec((1, tile_t, c_in),
                              lambda bb, jj: (bb, jnp.minimum(jj, nt_in - 1), 0))
        hl_spec = pl.BlockSpec((1, 1, hal_l, c_in), halo_map)
        hr_spec = pl.BlockSpec((1, 1, hal_r, c_in), halo_map)
        w_spec = pl.BlockSpec((kernel_size, c_in, c_out), const3_map)
        b_spec = pl.BlockSpec((1, c_out), const2_map)
        out_spec = pl.BlockSpec((1, tile_t, c_out), lambda bb, jj: (bb, jj, 0))
        out_shape = jax.ShapeDtypeStruct((b, t_out, c_out), x.dtype)
    else:
        x_spec = pl.BlockSpec((1, c_in, tile_t),
                              lambda bb, jj: (bb, 0, jnp.minimum(jj, nt_in - 1)))
        hl_spec = pl.BlockSpec((1, 1, c_in, hal_l), halo_map)
        hr_spec = pl.BlockSpec((1, 1, c_in, hal_r), halo_map)
        w_spec = pl.BlockSpec((kernel_size, c_out, c_in), const3_map)
        b_spec = pl.BlockSpec((c_out, 1), const2_map)
        out_spec = pl.BlockSpec((1, c_out, tile_t), lambda bb, jj: (bb, 0, jj))
        out_shape = jax.ShapeDtypeStruct((b, c_out, t_out), x.dtype)

    in_specs, inputs = [x_spec], [x]
    if hal_l > 0:
        in_specs.append(hl_spec); inputs.append(left_halo)
    if hal_r > 0:
        in_specs.append(hr_spec); inputs.append(right_halo)
    in_specs += [w_spec, b_spec]
    inputs += [w_taps, bias2d]

    # ---- scheduling hints --------------------------------------------------------------------
    w_bytes = jnp.dtype(mxu_dtype).itemsize
    halo_elems = (hal_l + hal_r) * c_in
    vmem_need = (2 * c_in * tile_t * in_bytes            # x stream (double buffered)
                 + 2 * halo_elems * in_bytes             # halo streams
                 + kernel_size * c_in * c_out * w_bytes + c_out * 4
                 + 2 * c_out * tile_t * in_bytes         # output stream
                 + c_out * tile_t * 4                    # f32 accumulator
                 + c_in * (tile_t + hal_l + hal_r) * max(in_bytes, 4))   # window temp
    vmem_limit = int(min(max(2 * vmem_need, 16 << 20), 64 << 20))

    cost = pl.CostEstimate(
        flops=2 * b * t_out * c_out * c_in * kernel_size,
        transcendentals=0,
        bytes_accessed=int(x.size * in_bytes + b * nt * halo_elems * in_bytes
                           + w_taps.size * w_bytes + c_out * 4
                           + b * t_out * c_out * in_bytes))

    # TODO(synk): on v7x, marking the batch axis pltpu.CORE_PARALLEL engages the second
    # TensorCore; kept as plain "parallel" here for portability across generations.
    return pl.pallas_call(
        kernel,
        out_shape=out_shape,
        grid=(b, nt),
        in_specs=in_specs,
        out_specs=out_spec,
        compiler_params=pltpu.CompilerParams(
            dimension_semantics=("parallel", "parallel"),
            vmem_limit_bytes=vmem_limit),
        cost_estimate=cost,
    )(*inputs)


def _xavier_uniform(key, shape, gain=1.0, dtype=jnp.float32):
    # PyTorch xavier_uniform_ for a Conv1d weight (C_out, C_in, K).
    c_out, c_in, k = shape
    fan_in, fan_out = c_in * k, c_out * k
    bound = gain * (6.0 / (fan_in + fan_out)) ** 0.5
    return jax.random.uniform(key, shape, dtype, minval=-bound, maxval=bound)


def _reference(x, weight, bias, *, padding, dilation):
    y = lax.conv_general_dilated(
        x, weight, window_strides=(1,), padding=[(padding, padding)],
        rhs_dilation=(dilation,), dimension_numbers=("NCH", "OIH", "NCH"))
    return y + bias[None, :, None]


if __name__ == "__main__":
    keys = jax.random.split(jax.random.PRNGKey(0), 10)

    # ---- test 1: ConvNorm(4, 8, kernel_size=3), B=2, T=16 (single full-width tile) ----
    in_c, out_c, ksz = 4, 8, 3
    batch, seq = 2, 16
    x = jax.random.normal(keys[0], (batch, in_c, seq), jnp.float32)
    w = _xavier_uniform(keys[1], (out_c, in_c, ksz))         # calculate_gain('linear')==1
    fan_in = in_c * ksz
    bsc = jax.random.uniform(keys[2], (out_c,), jnp.float32,
                             minval=-1.0 / fan_in ** 0.5, maxval=1.0 / fan_in ** 0.5)
    pad = (ksz - 1) // 2
    y = jax.block_until_ready(conv_norm(x, w, bsc, kernel_size=ksz))
    y_ref = _reference(x, w, bsc, padding=pad, dilation=1)
    assert y.shape == (batch, out_c, seq), y.shape
    assert jnp.allclose(y, y_ref, atol=1e-5, rtol=1e-5), "test1 mismatch"

    # ---- test 2: multi-tile halo path with dilation (K=5, d=2, T=384, tile_t=128) -----
    in_c2, out_c2, ksz2, dil2 = 4, 8, 5, 2
    batch2, seq2 = 2, 384
    x2 = jax.random.normal(keys[3], (batch2, in_c2, seq2), jnp.float32)
    w2 = _xavier_uniform(keys[4], (out_c2, in_c2, ksz2))
    b2 = jax.random.uniform(keys[5], (out_c2,), jnp.float32, minval=-0.1, maxval=0.1)
    pad2 = dil2 * (ksz2 - 1) // 2
    y2 = jax.block_until_ready(
        conv_norm(x2, w2, b2, kernel_size=ksz2, dilation=dil2, tile_t=128))
    y2_ref = _reference(x2, w2, b2, padding=pad2, dilation=dil2)
    assert jnp.allclose(y2, y2_ref, atol=1e-5, rtol=1e-5), "test2 mismatch"

    # ---- test 3: transpose=True path, native (B, T, C) kernel, ragged multi-tile ------
    seq3 = 160
    x3 = jax.random.normal(keys[6], (batch, seq3, in_c), jnp.float32)   # (B, T, C)
    y3 = jax.block_until_ready(
        conv_norm(x3, w, bsc, kernel_size=ksz, transpose=True, tile_t=128))
    y3_ref = jnp.transpose(
        _reference(jnp.transpose(x3, (0, 2, 1)), w, bsc, padding=pad, dilation=1),
        (0, 2, 1))
    assert y3.shape == (batch, seq3, out_c), y3.shape
    assert jnp.allclose(y3, y3_ref, atol=1e-5, rtol=1e-5), "test3 mismatch"

    # ---- test 4: kernel_size=1 (ConvNorm default, pointwise conv) ----------------------
    w1 = _xavier_uniform(keys[7], (out_c, in_c, 1))
    y4 = jax.block_until_ready(conv_norm(x, w1, bsc, kernel_size=1))
    y4_ref = _reference(x, w1, bsc, padding=0, dilation=1)
    assert jnp.allclose(y4, y4_ref, atol=1e-5, rtol=1e-5), "test4 mismatch"

    # ---- test 5: ragged last tile (T=200, tile_t=128) exercises the boundary mask ------
    seq5 = 200
    x5 = jax.random.normal(keys[8], (batch, in_c, seq5), jnp.float32)
    y5 = jax.block_until_ready(conv_norm(x5, w, bsc, kernel_size=ksz, tile_t=128))
    y5_ref = _reference(x5, w, bsc, padding=pad, dilation=1)
    assert jnp.allclose(y5, y5_ref, atol=1e-5, rtol=1e-5), "test5 mismatch"

    # ---- test 6: bf16 MXU operands with f32 accumulation (loose tolerance) -------------
    y6 = jax.block_until_ready(
        conv_norm(x2, w2, b2, kernel_size=ksz2, dilation=dil2, tile_t=128,
                  compute_dtype=jnp.bfloat16))
    assert jnp.allclose(y6, y2_ref, atol=5e-2, rtol=5e-2), "test6 mismatch"

    print("KERNEL_OK")
</pallas_src>

<mosaic_0001>
module attributes {stable_mosaic.version = 11 : i64} {
  func.func @kernel(%arg0: i32, %arg1: i32, %arg2: memref<1x4x16xf32, #tpu.memory_space<vmem>>, %arg3: memref<1x1x4x1xf32, #tpu.memory_space<vmem>>, %arg4: memref<1x1x4x1xf32, #tpu.memory_space<vmem>>, %arg5: memref<3x8x4xf32, #tpu.memory_space<vmem>>, %arg6: memref<8x1xf32, #tpu.memory_space<vmem>>, %arg7: memref<1x8x16xf32, #tpu.memory_space<vmem>>) attributes {dimension_semantics = [#tpu.dimension_semantics<parallel>, #tpu.dimension_semantics<parallel>], iteration_bounds = array<i64: 2, 1>, scalar_prefetch = 0 : i64, scratch_operands = 0 : i64, tpu.core_type = #tpu.core_type<tc>, window_params = [{transform_indices = @transform_0, window_bounds = array<i64: 1, 4, 16>}, {transform_indices = @transform_1, window_bounds = array<i64: 1, 1, 4, 1>}, {transform_indices = @transform_2, window_bounds = array<i64: 1, 1, 4, 1>}, {pipeline_mode = #tpu.pipeline_mode<synchronous>, transform_indices = @transform_3, window_bounds = array<i64: 3, 8, 4>}, {pipeline_mode = #tpu.pipeline_mode<synchronous>, transform_indices = @transform_4, window_bounds = array<i64: 8, 1>}, {transform_indices = @transform_5, window_bounds = array<i64: 1, 8, 16>}]} {
    %c0 = arith.constant 0 : index
    %c0_0 = arith.constant 0 : index
    %c0_1 = arith.constant 0 : index
    %0 = vector.load %arg2[%c0, %c0_0, %c0_1] : memref<1x4x16xf32, #tpu.memory_space<vmem>>, vector<1x4x16xf32>
    %1 = vector.shape_cast %0 : vector<1x4x16xf32> to vector<4x16xf32>
    %c0_2 = arith.constant 0 : index
    %c0_3 = arith.constant 0 : index
    %c0_4 = arith.constant 0 : index
    %c0_5 = arith.constant 0 : index
    %2 = vector.load %arg3[%c0_2, %c0_3, %c0_4, %c0_5] : memref<1x1x4x1xf32, #tpu.memory_space<vmem>>, vector<1x1x4x1xf32>
    %3 = vector.shape_cast %2 : vector<1x1x4x1xf32> to vector<4x1xf32>
    %c0_6 = arith.constant 0 : index
    %c0_7 = arith.constant 0 : index
    %c0_8 = arith.constant 0 : index
    %c0_9 = arith.constant 0 : index
    %4 = vector.load %arg4[%c0_6, %c0_7, %c0_8, %c0_9] : memref<1x1x4x1xf32, #tpu.memory_space<vmem>>, vector<1x1x4x1xf32>
    %5 = vector.shape_cast %4 : vector<1x1x4x1xf32> to vector<4x1xf32>
    %6 = tpu.concatenate %3, %1, %5 in 1 : vector<4x1xf32>, vector<4x16xf32>, vector<4x1xf32> -> vector<4x18xf32>
    %c0_10 = arith.constant 0 : index
    %c0_11 = arith.constant 0 : index
    %c0_12 = arith.constant 0 : index
    %7 = vector.load %arg5[%c0_10, %c0_11, %c0_12] : memref<3x8x4xf32, #tpu.memory_space<vmem>>, vector<1x8x4xf32>
    %8 = vector.shape_cast %7 : vector<1x8x4xf32> to vector<8x4xf32>
    %9 = vector.extract_strided_slice %6 {offsets = [0, 0], sizes = [4, 16], strides = [1, 1]} : vector<4x18xf32> to vector<4x16xf32>
    %cst = arith.constant dense<0.000000e+00> : vector<8x16xf32>
    %10 = tpu.matmul %8, %9, %cst {dimension_numbers = #tpu.dot_dimension_numbers<[1], [0], [0], [1], [0, 0, 1, 1], [], []>} : vector<8x4xf32>, vector<4x16xf32>, vector<8x16xf32> -> vector<8x16xf32>
    %c1 = arith.constant 1 : index
    %c0_13 = arith.constant 0 : index
    %c0_14 = arith.constant 0 : index
    %11 = vector.load %arg5[%c1, %c0_13, %c0_14] : memref<3x8x4xf32, #tpu.memory_space<vmem>>, vector<1x8x4xf32>
    %12 = vector.shape_cast %11 : vector<1x8x4xf32> to vector<8x4xf32>
    %13 = vector.extract_strided_slice %6 {offsets = [0, 1], sizes = [4, 16], strides = [1, 1]} : vector<4x18xf32> to vector<4x16xf32>
    %cst_15 = arith.constant dense<0.000000e+00> : vector<8x16xf32>
    %14 = tpu.matmul %12, %13, %cst_15 {dimension_numbers = #tpu.dot_dimension_numbers<[1], [0], [0], [1], [0, 0, 1, 1], [], []>} : vector<8x4xf32>, vector<4x16xf32>, vector<8x16xf32> -> vector<8x16xf32>
    %15 = arith.addf %10, %14 : vector<8x16xf32>
    %c2 = arith.constant 2 : index
    %c0_16 = arith.constant 0 : index
    %c0_17 = arith.constant 0 : index
    %16 = vector.load %arg5[%c2, %c0_16, %c0_17] : memref<3x8x4xf32, #tpu.memory_space<vmem>>, vector<1x8x4xf32>
    %17 = vector.shape_cast %16 : vector<1x8x4xf32> to vector<8x4xf32>
    %18 = vector.extract_strided_slice %6 {offsets = [0, 2], sizes = [4, 16], strides = [1, 1]} : vector<4x18xf32> to vector<4x16xf32>
    %cst_18 = arith.constant dense<0.000000e+00> : vector<8x16xf32>
    %19 = tpu.matmul %17, %18, %cst_18 {dimension_numbers = #tpu.dot_dimension_numbers<[1], [0], [0], [1], [0, 0, 1, 1], [], []>} : vector<8x4xf32>, vector<4x16xf32>, vector<8x16xf32> -> vector<8x16xf32>
    %20 = arith.addf %15, %19 : vector<8x16xf32>
    %c0_19 = arith.constant 0 : index
    %c0_20 = arith.constant 0 : index
    %21 = vector.load %arg6[%c0_19, %c0_20] : memref<8x1xf32, #tpu.memory_space<vmem>>, vector<8x1xf32>
    %22 = vector.broadcast %21 : vector<8x1xf32> to vector<8x16xf32>
    %23 = arith.addf %20, %22 : vector<8x16xf32>
    %c0_21 = arith.constant 0 : index
    %c0_22 = arith.constant 0 : index
    %c0_23 = arith.constant 0 : index
    %24 = vector.load %arg7[%c0_21, %c0_22, %c0_23] : memref<1x8x16xf32, #tpu.memory_space<vmem>>, vector<1x8x16xf32>
    %25 = vector.shape_cast %24 : vector<1x8x16xf32> to vector<8x16xf32>
    %26 = vector.shape_cast %23 : vector<8x16xf32> to vector<1x8x16xf32>
    tpu.vector_store %arg7[%c0_21, %c0_22, %c0_23], %26 {strides = array<i32>} : memref<1x8x16xf32, #tpu.memory_space<vmem>>, vector<1x8x16xf32>,
    return
  }
  func.func @transform_0(%arg0: i32, %arg1: i32) -> (i32, i32, i32) {
    %c0_i32 = arith.constant 0 : i32
    %0 = arith.minsi %arg1, %c0_i32 : i32
    %c0_i32_0 = arith.constant 0 : i32
    %c0_i32_1 = arith.constant 0 : i32
    return %arg0, %c0_i32_0, %0 : i32, i32, i32
  }
  func.func @transform_1(%arg0: i32, %arg1: i32) -> (i32, i32, i32, i32) {
    %c0_i32 = arith.constant 0 : i32
    %c0_i32_0 = arith.constant 0 : i32
    %c0_i32_1 = arith.constant 0 : i32
    return %arg0, %arg1, %c0_i32, %c0_i32_0 : i32, i32, i32, i32
  }
  func.func @transform_2(%arg0: i32, %arg1: i32) -> (i32, i32, i32, i32) {
    %c0_i32 = arith.constant 0 : i32
    %c0_i32_0 = arith.constant 0 : i32
    %c0_i32_1 = arith.constant 0 : i32
    return %arg0, %arg1, %c0_i32, %c0_i32_0 : i32, i32, i32, i32
  }
  func.func @transform_3(%arg0: i32, %arg1: i32) -> (i32, i32, i32) {
    %c0_i32 = arith.constant 0 : i32
    %c0_i32_0 = arith.constant 0 : i32
    %c0_i32_1 = arith.constant 0 : i32
    %c0_i32_2 = arith.constant 0 : i32
    return %c0_i32, %c0_i32_0, %c0_i32_1 : i32, i32, i32
  }
  func.func @transform_4(%arg0: i32, %arg1: i32) -> (i32, i32) {
    %c0_i32 = arith.constant 0 : i32
    %c0_i32_0 = arith.constant 0 : i32
    %c0_i32_1 = arith.constant 0 : i32
    return %c0_i32, %c0_i32_0 : i32, i32
  }
  func.func @transform_5(%arg0: i32, %arg1: i32) -> (i32, i32, i32) {
    %c0_i32 = arith.constant 0 : i32
    %c0_i32_0 = arith.constant 0 : i32
    return %arg0, %c0_i32, %arg1 : i32, i32, i32
  }
}

</mosaic_0001>

<llo_original>
// kernel: tpu_custom_call.1
$region0: #{tpu_custom_call.1}
  #allocation0 [shape = 'u32[]', space=smem, size = 0x4, offset = 0x4, fixed_abs, tag = 'smem constant byte address 0x4 - core index']
  #allocation1 [shape = 'u32[72,128]{1,0:T(1,128)}', space=vmem, size = 0x9000, scoped, tag = 'internal scratch']
  %s0 = inlined_call_operand.vmem [shape: f32[2,4,16], index: 0, kind: input, shape index: {}]
  %s1 = inlined_call_operand.vmem [shape: f32[2,1,4,1], index: 1, kind: input, shape index: {}]
  %s2 = inlined_call_operand.vmem [shape: f32[2,1,4,1], index: 2, kind: input, shape index: {}]
  %s3 = inlined_call_operand.vmem [shape: f32[3,8,4], index: 3, kind: input, shape index: {}]
  %s4 = inlined_call_operand.vmem [shape: f32[8,1], index: 4, kind: input, shape index: {}]
  %s5 = inlined_call_operand.hbm [shape: f32[2,8,16], index: 5, kind: output, shape index: {}]
  %s6 = sld [smem:[#allocation0]]
  $region53: #{tpu_custom_call.1} parent=0
    _
  %s8 = ssub.s32 1, %s6
  %s9 = scalar_select 0, %s8, %s6
  $region1: #{tpu_custom_call.1} parent=0
    #allocation2 [shape = 'u8[8192]{0}', space=vmem, size = 0x2000, scoped, tag = 'output window, operand 0']
    #allocation3 [shape = 's32[2]{0}', space=sflag, size = 0x8, scoped, tag = 'scoped memory for tpu_custom_call.1']
    %10 = vsyncpa [#allocation3], 0
    %s11 = scalar_lea.sflag [#allocation3], 1
    %12 = vsyncpa %s11, 0
    loop: start=0, step=1, limit=4
    $region2: #{tpu_custom_call.1} parent=1 // loop_pre_header
      _
    $region3: #{tpu_custom_call.1} parent=1 // loop_header
      %s14 = sphi 0, %s18
      %p15 = scmp.ge.s32.totalorder %s14, 4
      %s21 = sphi 0, %s33
      %s22 = sphi 0, %s29
      %s23 = sphi 0, %s21
      %s24 = sphi 0, %s22
      %s25 = sphi 0, %s23
      %s26 = sphi 0, %s24
      %s42 = sphi 0, %s44
      %s45 = sphi 0, %s42
      %s46 = sphi 0, %s45
      %s62 = sphi 0, %s46
      %s70 = sphi 0, %s72
      %s73 = sphi 0, %s70
      %s74 = sphi 0, %s73
      %s90 = sphi 0, %s74
      %s98 = sphi 0, %s100
      %s101 = sphi 0, %s98
      %s102 = sphi 0, %s101
      %s118 = sphi 0, %s102
      %s122 = sphi 0, %s122
      %s124 = sphi 0, %s122
      %s125 = sphi 0, %s124
      %s139 = sphi 0, %s125
      %s143 = sphi 0, %s143
      %s145 = sphi 0, %s143
      %s146 = sphi 0, %s145
      %s160 = sphi 0, %s146
      %s168 = sphi 0, %s170
      %s171 = sphi 0, %s168
      %s172 = sphi 0, %s171
      %s188 = sphi 0, %s172
    $region4: #{tpu_custom_call.1} parent=1 // loop_header_branch
      %17 = sbr.rel (%p15) target = $region8
    $region5: #{tpu_custom_call.1} parent=1 // loop_body
      %s19 = ssub.s32 %s14, 1
      %s20 = ssub.s32 %s14, 2
      %s27 = sadd.s32 1, %s22
      %p28 = scmp.ge.s32.totalorder %s27, 1
      %s29 = scalar_select %p28, 0, %s27
      %s30 = sadd.s32 1, %s21
      %s31 = scalar_select %p28, %s30, %s21
      %p32 = scmp.ge.s32.totalorder %s31, 2
      %s33 = scalar_select %p32, 0, %s31
      %p34 = scmp.lt.s32.totalorder %s22, 0
      %s35 = scalar_select %p34, %s22, 0
      %p36 = scmp.lt.s32.totalorder %s29, 0
      %s37 = scalar_select %p36, %s29, 0
      %s38 = ssub.s32 %s21, %s33
      %s39 = ssub.s32 %s35, %s37
      %s40 = sor.u32 %s38, %s39
      %p41 = scmp.eq.s32.totalorder %s40, 0
      %s43 = sadd.s32 %s42, 1
      %s44 = scalar_select %p41, %s42, %s43
      %p47 = pneg %p41
      %p48 = scmp.eq.s32.totalorder %s14, 1
      %p49 = por %p47, %p48
      %p50 = scmp.ne.s32.totalorder %s42, %s45
      %p51 = scmp.eq.s32.totalorder %s14, 0
      %p52 = por %p50, %p51
      %p53 = scmp.ne.s32.totalorder %s42, %s45
      %p54 = scmp.eq.s32.totalorder %s19, 1
      %p55 = por %p53, %p54
      %p56 = scmp.ne.s32.totalorder %s45, %s46
      %p57 = scmp.eq.s32.totalorder %s19, 0
      %p58 = por %p56, %p57
      %p59 = scmp.ne.s32.totalorder %s45, %s46
      %p60 = scmp.eq.s32.totalorder %s20, 1
      %p61 = por %p59, %p60
      %p63 = scmp.ne.s32.totalorder %s46, %s62
      %p64 = scmp.eq.s32.totalorder %s20, 0
      %p65 = por %p63, %p64
      %s66 = ssub.s32 %s21, %s33
      %s67 = ssub.s32 %s22, %s29
      %s68 = sor.u32 %s66, %s67
      %p69 = scmp.eq.s32.totalorder %s68, 0
      %s71 = sadd.s32 %s70, 1
      %s72 = scalar_select %p69, %s70, %s71
      %p75 = pneg %p69
      %p76 = scmp.eq.s32.totalorder %s14, 1
      %p77 = por %p75, %p76
      %p78 = scmp.ne.s32.totalorder %s70, %s73
      %p79 = scmp.eq.s32.totalorder %s14, 0
      %p80 = por %p78, %p79
      %p81 = scmp.ne.s32.totalorder %s70, %s73
      %p82 = scmp.eq.s32.totalorder %s19, 1
      %p83 = por %p81, %p82
      %p84 = scmp.ne.s32.totalorder %s73, %s74
      %p85 = scmp.eq.s32.totalorder %s19, 0
      %p86 = por %p84, %p85
      %p87 = scmp.ne.s32.totalorder %s73, %s74
      %p88 = scmp.eq.s32.totalorder %s20, 1
      %p89 = por %p87, %p88
      %p91 = scmp.ne.s32.totalorder %s74, %s90
      %p92 = scmp.eq.s32.totalorder %s20, 0
      %p93 = por %p91, %p92
      %s94 = ssub.s32 %s21, %s33
      %s95 = ssub.s32 %s22, %s29
      %s96 = sor.u32 %s94, %s95
      %p97 = scmp.eq.s32.totalorder %s96, 0
      %s99 = sadd.s32 %s98, 1
      %s100 = scalar_select %p97, %s98, %s99
      %p103 = pneg %p97
      %p104 = scmp.eq.s32.totalorder %s14, 1
      %p105 = por %p103, %p104
      %p106 = scmp.ne.s32.totalorder %s98, %s101
      %p107 = scmp.eq.s32.totalorder %s14, 0
      %p108 = por %p106, %p107
      %p109 = scmp.ne.s32.totalorder %s98, %s101
      %p110 = scmp.eq.s32.totalorder %s19, 1
      %p111 = por %p109, %p110
      %p112 = scmp.ne.s32.totalorder %s101, %s102
      %p113 = scmp.eq.s32.totalorder %s19, 0
      %p114 = por %p112, %p113
      %p115 = scmp.ne.s32.totalorder %s101, %s102
      %p116 = scmp.eq.s32.totalorder %s20, 1
      %p117 = por %p115, %p116
      %p119 = scmp.ne.s32.totalorder %s102, %s118
      %p120 = scmp.eq.s32.totalorder %s20, 0
      %p121 = por %p119, %p120
      %s123 = sadd.s32 %s122, 1
      %p126 = scmp.eq.s32.totalorder %s14, 1
      %p127 = scmp.ne.s32.totalorder %s122, %s124
      %p128 = scmp.eq.s32.totalorder %s14, 0
      %p129 = por %p127, %p128
      %p130 = scmp.ne.s32.totalorder %s122, %s124
      %p131 = scmp.eq.s32.totalorder %s19, 1
      %p132 = por %p130, %p131
      %p133 = scmp.ne.s32.totalorder %s124, %s125
      %p134 = scmp.eq.s32.totalorder %s19, 0
      %p135 = por %p133, %p134
      %p136 = scmp.ne.s32.totalorder %s124, %s125
      %p137 = scmp.eq.s32.totalorder %s20, 1
      %p138 = por %p136, %p137
      %p140 = scmp.ne.s32.totalorder %s125, %s139
      %p141 = scmp.eq.s32.totalorder %s20, 0
      %p142 = por %p140, %p141
      %s144 = sadd.s32 %s143, 1
      %p147 = scmp.eq.s32.totalorder %s14, 1
      %p148 = scmp.ne.s32.totalorder %s143, %s145
      %p149 = scmp.eq.s32.totalorder %s14, 0
      %p150 = por %p148, %p149
      %p151 = scmp.ne.s32.totalorder %s143, %s145
      %p152 = scmp.eq.s32.totalorder %s19, 1
      %p153 = por %p151, %p152
      %p154 = scmp.ne.s32.totalorder %s145, %s146
      %p155 = scmp.eq.s32.totalorder %s19, 0
      %p156 = por %p154, %p155
      %p157 = scmp.ne.s32.totalorder %s145, %s146
      %p158 = scmp.eq.s32.totalorder %s20, 1
      %p159 = por %p157, %p158
      %p161 = scmp.ne.s32.totalorder %s146, %s160
      %p162 = scmp.eq.s32.totalorder %s20, 0
      %p163 = por %p161, %p162
      %s164 = ssub.s32 %s21, %s33
      %s165 = ssub.s32 %s22, %s29
      %s166 = sor.u32 %s164, %s165
      %p167 = scmp.eq.s32.totalorder %s166, 0
      %s169 = sadd.s32 %s168, 1
      %s170 = scalar_select %p167, %s168, %s169
      %p173 = pneg %p167
      %p174 = scmp.eq.s32.totalorder %s14, 1
      %p175 = por %p173, %p174
      %p176 = scmp.ne.s32.totalorder %s168, %s171
      %p177 = scmp.eq.s32.totalorder %s14, 0
      %p178 = por %p176, %p177
      %p179 = scmp.ne.s32.totalorder %s168, %s171
      %p180 = scmp.eq.s32.totalorder %s19, 1
      %p181 = por %p179, %p180
      %p182 = scmp.ne.s32.totalorder %s171, %s172
      %p183 = scmp.eq.s32.totalorder %s19, 0
      %p184 = por %p182, %p183
      %p185 = scmp.ne.s32.totalorder %s171, %s172
      %p186 = scmp.eq.s32.totalorder %s20, 1
      %p187 = por %p185, %p186
      %p189 = scmp.ne.s32.totalorder %s172, %s188
      %p190 = scmp.eq.s32.totalorder %s20, 0
      %p191 = por %p189, %p190
      %p192 = scmp.le.s32.totalorder 1, %s14
      %p193 = scmp.lt.s32.totalorder %s14, 3
      %p194 = pnand %p192, %p193
      %p195 = pneg %p194
      // Predicated region
      $region9: #{tpu_custom_call.1} parent=5 // pred_check
        _
      $region10: #{tpu_custom_call.1} parent=5 // pred_check_branch
        %197 = sbr.rel (%p194) target = $region12
      $region11: #{tpu_custom_call.1} parent=5 // pred_region
        %s198 = ssub.s32 %s14, 1
        // Predicated region
        $region13: #{tpu_custom_call.1} parent=11 // pred_check
          %p199 = pneg %p135
        $region14: #{tpu_custom_call.1} parent=11 // pred_check_branch
          %201 = sbr.rel (%p199) target = $region16
        $region15: #{tpu_custom_call.1} parent=11 // pred_region
          _
        $region16: #{tpu_custom_call.1} parent=11 // pred_fallthru
          _
        // Predicated region
        $region17: #{tpu_custom_call.1} parent=11 // pred_check
          %p202 = pneg %p156
        $region18: #{tpu_custom_call.1} parent=11 // pred_check_branch
          %204 = sbr.rel (%p202) target = $region20
        $region19: #{tpu_custom_call.1} parent=11 // pred_region
          _
        $region20: #{tpu_custom_call.1} parent=11 // pred_fallthru
          _
      $region12: #{tpu_custom_call.1} parent=5 // pred_fallthru
        _
      %p205 = scmp.lt.s32.totalorder %s14, 2
      // Predicated region
      $region21: #{tpu_custom_call.1} parent=5 // pred_check
        %p206 = pneg %p205
      $region22: #{tpu_custom_call.1} parent=5 // pred_check_branch
        %208 = sbr.rel (%p206) target = $region24
      $region23: #{tpu_custom_call.1} parent=5 // pred_region
        // Predicated region
        $region25: #{tpu_custom_call.1} parent=23 // pred_check
          %p209 = pneg %p52
        $region26: #{tpu_custom_call.1} parent=23 // pred_check_branch
          %211 = sbr.rel (%p209) target = $region28
        $region27: #{tpu_custom_call.1} parent=23 // pred_region
          %p212 = scmp.lt.s32.totalorder %s22, 0
          %s213 = scalar_select %p212, %s22, 0
          %p214 = scmp.lt.s32.totalorder %s21, 1
          %s215 = scalar_select %p214, %s21, 1
          %p216 = scmp.lt.s32.totalorder %s213, 0
          %s217 = scalar_select %p216, %s213, 0
          %s218 = sadd.s32 %s217, %s215
          %s219 = smul.addr %s218, 4
          %s220 = scalar_lea.vmem %s0, %s219
          %p221 = scmp.lt.s32.totalorder %s22, 0
          %s222 = scalar_select %p221, %s22, 0
        $region28: #{tpu_custom_call.1} parent=23 // pred_fallthru
          _
        // Predicated region
        $region29: #{tpu_custom_call.1} parent=23 // pred_check
          %p223 = pneg %p80
        $region30: #{tpu_custom_call.1} parent=23 // pred_check_branch
          %225 = sbr.rel (%p223) target = $region32
        $region31: #{tpu_custom_call.1} parent=23 // pred_region
          %p226 = scmp.lt.s32.totalorder %s21, 1
          %s227 = scalar_select %p226, %s21, 1
          %p228 = scmp.lt.s32.totalorder %s22, 0
          %s229 = scalar_select %p228, %s22, 0
          %s230 = sadd.s32 %s229, %s227
          %s231 = smul.addr %s230, 4
          %s232 = scalar_lea.vmem %s1, %s231
        $region32: #{tpu_custom_call.1} parent=23 // pred_fallthru
          _
        // Predicated region
        $region33: #{tpu_custom_call.1} parent=23 // pred_check
          %p233 = pneg %p108
        $region34: #{tpu_custom_call.1} parent=23 // pred_check_branch
          %235 = sbr.rel (%p233) target = $region36
        $region35: #{tpu_custom_call.1} parent=23 // pred_region
          %p236 = scmp.lt.s32.totalorder %s21, 1
          %s237 = scalar_select %p236, %s21, 1
          %p238 = scmp.lt.s32.totalorder %s22, 0
          %s239 = scalar_select %p238, %s22, 0
          %s240 = sadd.s32 %s239, %s237
          %s241 = smul.addr %s240, 4
          %s242 = scalar_lea.vmem %s2, %s241
        $region36: #{tpu_custom_call.1} parent=23 // pred_fallthru
          _
      $region24: #{tpu_custom_call.1} parent=5 // pred_fallthru
        _
      %p243 = scmp.le.s32.totalorder 1, %s14
      %p244 = scmp.lt.s32.totalorder %s14, 3
      %p245 = pnand %p243, %p244
      %p246 = pneg %p245
      // Predicated region
      $region37: #{tpu_custom_call.1} parent=5 // pred_check
        _
      $region38: #{tpu_custom_call.1} parent=5 // pred_check_branch
        %248 = sbr.rel (%p245) target = $region40
      $region39: #{tpu_custom_call.1} parent=5 // pred_region
        %s249 = ssub.s32 %s14, 1
        %p250 = scmp.lt.s32.totalorder %s24, 0
        %s251 = scalar_select %p250, %s24, 0
        %p252 = scmp.lt.s32.totalorder %s23, 1
        %s253 = scalar_select %p252, %s23, 1
        %p254 = scmp.lt.s32.totalorder %s251, 0
        %s255 = scalar_select %p254, %s251, 0
        %s256 = sadd.s32 %s255, %s253
        %s257 = smul.addr %s256, 4
        %s258 = scalar_lea.vmem %s0, %s257
        %p259 = pneg %p58
        %p260 = pneg %p55
        %p261 = scmp.lt.s32.totalorder %s23, 1
        %s262 = scalar_select %p261, %s23, 1
        %p263 = scmp.lt.s32.totalorder %s24, 0
        %s264 = scalar_select %p263, %s24, 0
        %s265 = sadd.s32 %s264, %s262
        %s266 = smul.addr %s265, 4
        %s267 = scalar_lea.vmem %s1, %s266
        %p268 = pneg %p86
        %p269 = pneg %p83
        %p270 = scmp.lt.s32.totalorder %s23, 1
        %s271 = scalar_select %p270, %s23, 1
        %p272 = scmp.lt.s32.totalorder %s24, 0
        %s273 = scalar_select %p272, %s24, 0
        %s274 = sadd.s32 %s273, %s271
        %s275 = smul.addr %s274, 4
        %s276 = scalar_lea.vmem %s2, %s275
        %p277 = pneg %p114
        %p278 = pneg %p111
        %p279 = pneg %p135
        %p280 = pneg %p132
        %p281 = pneg %p156
        %p282 = pneg %p153
        %p283 = pneg %p184
        %p284 = pneg %p181
        %s285 = sand.u32 %s171, 1
        %s286 = scalar_lea.sflag [#allocation3], %s285
        %s287 = sand.u32 %s171, 1
        %s288 = smul.addr %s287, 8
        %s289 = scalar_lea.vmem [#allocation2], %s288
        %p290 = scmp.lt.s32.totalorder %s24, 0
        %s291 = scalar_select %p290, %s24, 0
        %p292 = scmp.lt.s32.totalorder %s23, 1
        %s293 = scalar_select %p292, %s23, 1
        %p294 = scmp.lt.s32.totalorder %s291, 0
        %s295 = scalar_select %p294, %s291, 0
        %s296 = sadd.s32 %s295, %s293
        %s297 = smul.addr %s296, 4
        %s298 = scalar_lea.vmem %s0, %s297
        %p299 = scmp.lt.s32.totalorder %s24, 0
        %s300 = scalar_select %p299, %s24, 0
        %p301 = scmp.lt.s32.totalorder %s23, 1
        %s302 = scalar_select %p301, %s23, 1
        %p303 = scmp.lt.s32.totalorder %s24, 0
        %s304 = scalar_select %p303, %s24, 0
        %s305 = sadd.s32 %s304, %s302
        %s306 = smul.addr %s305, 4
        %s307 = scalar_lea.vmem %s1, %s306
        %p308 = scmp.lt.s32.totalorder %s23, 1
        %s309 = scalar_select %p308, %s23, 1
        %p310 = scmp.lt.s32.totalorder %s24, 0
        %s311 = scalar_select %p310, %s24, 0
        %s312 = sadd.s32 %s311, %s309
        %s313 = smul.addr %s312, 4
        %s314 = scalar_lea.vmem %s2, %s313
        %v315 = vld [vmem:[%s298] sm:$0xf]
        %v316 = vld [vmem:[%s307] sm:$0xf]
        %v317 = vld [vmem:[%s314] sm:$0xf]
        %319 = vrot.lane.b32.xlu0 %v315, 1
        %v320 = vpop.permute.xlu0 %319
        %323 = vrot.lane.b32.xlu0 %v317, 17
        %v324 = vpop.permute.xlu0 %323
        %vm326 = vcmask 7168
        %v327 = vsel %vm326, %v316, %v320
        %vm328 = vcmask 138240
        %v329 = vsel %vm328, %v327, %v324
        %v330 = vld [vmem:[%s3] sm:$0xff]
        %s331 = scalar_lea.vmem %s3, 8
        %v332 = vld [vmem:[%s331] sm:$0xff]
        %334 = vrot.lane.b32.xlu0 %v329, 127
        %v335 = vpop.permute.xlu0 %334
        %vm336 = vcmask 31744
        %v338 = vsel %vm336, %v332, 0
        %vm340 = vcmask 1043456
        %v341 = vsel %vm340, %v335, 0
        %343 = vmatpush.msra.mxu0 0.0
        %344 = vmatpush.msra.mxu0 0.0
        %345 = vmatpush.msra.mxu0 0.0
        %346 = vmatpush.msra.mxu0 0.0
        %347 = vmatpush.msra.mxu0 0.0
        %348 = vmatpush.msra.mxu0 0.0
        %349 = vmatpush.msra.mxu0 0.0
        %350 = vmatpush.msra.mxu0 0.0
        %351 = vmatpush.msra.mxu0 0.0
        %352 = vmatpush.msra.mxu0 0.0
        %353 = vmatpush.msra.mxu0 0.0
        %354 = vmatpush.msra.mxu0 0.0
        %355 = vmatpush.msra.mxu0 0.0
        %356 = vmatpush.msra.mxu0 0.0
        %357 = vmatpush.msra.mxu0 0.0
        %358 = vmatpush.msra.mxu0 %v341
        %359 = vmatmul.f32.gmra.mxu0 %v338
        %v360 = vpop.f32.mrf.mxu0
        %v361 = vadd.f32 0.0, %v360
        %362 = vdwg.mxu0
        %v364 = vsel %vm336, %v330, 0
        %v366 = vsel %vm340, %v329, 0
        %368 = vmatpush.msra.mxu0 0.0
        %369 = vmatpush.msra.mxu0 0.0
        %370 = vmatpush.msra.mxu0 0.0
        %371 = vmatpush.msra.mxu0 0.0
        %372 = vmatpush.msra.mxu0 0.0
        %373 = vmatpush.msra.mxu0 0.0
        %374 = vmatpush.msra.mxu0 0.0
        %375 = vmatpush.msra.mxu0 0.0
        %376 = vmatpush.msra.mxu0 0.0
        %377 = vmatpush.msra.mxu0 0.0
        %378 = vmatpush.msra.mxu0 0.0
        %379 = vmatpush.msra.mxu0 0.0
        %380 = vmatpush.msra.mxu0 0.0
        %381 = vmatpush.msra.mxu0 0.0
        %382 = vmatpush.msra.mxu0 0.0
        %383 = vmatpush.msra.mxu0 %v366
        %384 = vmatmul.f32.gmra.mxu0 %v364
        %v385 = vpop.f32.mrf.mxu0
        %v386 = vadd.f32 %v361, %v385
        %387 = vdwg.mxu0
        %s388 = scalar_lea.vmem %s3, 16
        %v389 = vld [vmem:[%s388] sm:$0xff]
        %390 = vrot.lane.b32.xlu0 %v329, 126
        %v391 = vpop.permute.xlu0 %390
        %v393 = vsel %vm336, %v389, 0
        %v395 = vsel %vm340, %v391, 0
        %397 = vmatpush.msra.mxu0 0.0
        %398 = vmatpush.msra.mxu0 0.0
        %399 = vmatpush.msra.mxu0 0.0
        %400 = vmatpush.msra.mxu0 0.0
        %401 = vmatpush.msra.mxu0 0.0
        %402 = vmatpush.msra.mxu0 0.0
        %403 = vmatpush.msra.mxu0 0.0
        %404 = vmatpush.msra.mxu0 0.0
        %405 = vmatpush.msra.mxu0 0.0
        %406 = vmatpush.msra.mxu0 0.0
        %407 = vmatpush.msra.mxu0 0.0
        %408 = vmatpush.msra.mxu0 0.0
        %409 = vmatpush.msra.mxu0 0.0
        %410 = vmatpush.msra.mxu0 0.0
        %411 = vmatpush.msra.mxu0 0.0
        %412 = vmatpush.msra.mxu0 %v395
        %413 = vmatmul.f32.gmra.mxu0 %v393
        %v414 = vpop.f32.mrf.mxu0
        %v415 = vadd.f32 0.0, %v414
        %416 = vdwg.mxu0
        %v417 = vadd.f32 %v386, %v415
        %v418 = vld [vmem:[%s4] sm:$0xff]
        %420 = vset.pattern.permute.xlu0 0
        %421 = vperm.xlu0 %420, %v418
        %v422 = vpop.permute.xlu0 %421
        %v424 = vadd.f32 %v417, %v422
        %vm425 = vcmask 130048
        %426 = vst.msk [vmem:[%s289] sm:$0xff] %vm425, %v424
        %s427 = sand.u32 %s171, 1
        %s428 = scalar_lea.sflag [#allocation3], %s427
        %s429 = sand.u32 %s171, 1
        %s430 = smul.addr %s429, 8
        %s431 = scalar_lea.vmem [#allocation2], %s430
        // Predicated region
        $region41: #{tpu_custom_call.1} parent=39 // pred_check
          %p432 = pneg %p181
        $region42: #{tpu_custom_call.1} parent=39 // pred_check_branch
          %434 = sbr.rel (%p432) target = $region44
        $region43: #{tpu_custom_call.1} parent=39 // pred_region
          %436 = vsyncadd %s428, 0
          %s437 = sadd.s32 %s24, %s23
          %s438 = smul.addr %s437, 8
          %s439 = scalar_lea.hbm %s5, %s438
          %s441 = sshll.u32 %s431, 4
          %s442 = int_to_ptr.vmem [resolvable:$true] %s441
          %s443 = sshll.u32 %s439, 4
          %s444 = int_to_ptr.hbm [resolvable:$true] %s443
          %446 = dma.vmem_to_hbm [thread:$0]  %s442, 128, %s444, %s428
        $region44: #{tpu_custom_call.1} parent=39 // pred_fallthru
          _
      $region40: #{tpu_custom_call.1} parent=5 // pred_fallthru
        _
      %p447 = scmp.le.s32.totalorder 2, %s14
      // Predicated region
      $region45: #{tpu_custom_call.1} parent=5 // pred_check
        %p448 = pneg %p447
      $region46: #{tpu_custom_call.1} parent=5 // pred_check_branch
        %450 = sbr.rel (%p448) target = $region48
      $region47: #{tpu_custom_call.1} parent=5 // pred_region
        %s451 = ssub.s32 %s14, 2
        // Predicated region
        $region49: #{tpu_custom_call.1} parent=47 // pred_check
          %p452 = pneg %p187
        $region50: #{tpu_custom_call.1} parent=47 // pred_check_branch
          %454 = sbr.rel (%p452) target = $region52
        $region51: #{tpu_custom_call.1} parent=47 // pred_region
          %s455 = sand.u32 %s172, 1
          %s456 = scalar_lea.sflag [#allocation3], %s455
          %s457 = sand.u32 %s172, 1
          %s458 = smul.addr %s457, 8
          %s459 = scalar_lea.vmem [#allocation2], %s458
          %461 = dma.done %s456, 128
        $region52: #{tpu_custom_call.1} parent=47 // pred_fallthru
          _
      $region48: #{tpu_custom_call.1} parent=5 // pred_fallthru
        _
    $region6: #{tpu_custom_call.1} parent=1 // loop_footer
      %s18 = sadd.s32 1, %s14
    $region7: #{tpu_custom_call.1} parent=1 // loop_footer_branch
      %13 = sbr.rel target = $region3
    $region8: #{tpu_custom_call.1} parent=1 // loop_exit
      _
    %462 = vsyncpa [#allocation3], 1
    %s463 = scalar_lea.sflag [#allocation3], 1
    %464 = vsyncpa %s463, 1

</llo_original>
